<compile_context>
chip_gen: v7x
topology: tpu7x:2x2x1
jax: 0.10.0
libtpu: 0.0.40
codegen_flags: <defaults>
</compile_context>

<pallas_src>
import jax
import jax.numpy as jnp
from jax.experimental import pallas as pl
from jax.experimental.pallas import tpu as pltpu


def _mish_f32(x):
    # mish(x) = x * tanh(softplus(x)).
    # tanh(softplus(x)) rewritten with u = exp(-|x|) (never overflows):
    #   x >= 0:  (1 + 2u) / (2u^2 + 2u + 1)
    #   x <  0:  (u^2 + 2u) / (u^2 + 2u + 2)
    # One EUP exp + one EUP approx-reciprocal per element.
    u = jnp.exp(-jnp.abs(x))
    u2 = u * u
    pos = x >= 0.0
    num = jnp.where(pos, 1.0 + 2.0 * u, u2 + 2.0 * u)
    den = jnp.where(pos, 2.0 * u2 + 2.0 * u + 1.0, u2 + 2.0 * u + 2.0)
    return x * (num * pl.reciprocal(den, approx=True))


def mlp_head_kernel(x1_ref, x2_ref, w1_ref, b1_ref, w2_ref, b2_ref, o_ref):
    # Inputs arrive as bf16 (HBM bandwidth); element-wise math in f32.
    x = (x1_ref[...].astype(jnp.float32) + x2_ref[...].astype(jnp.float32)) * 0.5
    h = _mish_f32(x)

    # fc1 on the MXU: bf16 x bf16, f32 accumulation.
    h = jnp.dot(h.astype(w1_ref.dtype), w1_ref[...],
                preferred_element_type=jnp.float32)
    h = h + b1_ref[...].astype(jnp.float32)

    # nl1, do1(identity), nl2, do2(identity)
    h = _mish_f32(_mish_f32(h))

    # fc2: (H -> 1) projection as a VPU multiply + lane reduce.
    y = jnp.sum(h * w2_ref[...].astype(jnp.float32), axis=-1, keepdims=True)
    y = y + b2_ref[0, 0]

    o_ref[...] = y.astype(o_ref.dtype)


def _tpu_generation_defaults():
    """Per-generation tiling budget. Only v7x (64 MiB VMEM, 2 TCs) differs."""
    kind = ""
    try:
        kind = jax.devices()[0].device_kind.lower()
    except Exception:
        pass
    if "v7" in kind:
        return {"num_cores": 2, "vmem_budget": 40 << 20, "vmem_cap": 56 << 20}
    if "v5" in kind or "v6" in kind:
        # 128 MiB physical VMEM, single TensorCore -> biggest tiles.
        return {"num_cores": 1, "vmem_budget": 80 << 20, "vmem_cap": 100 << 20}
    # Unknown chip: conservative budget (safe on 64 MiB VMEM).
    return {"num_cores": 1, "vmem_budget": 40 << 20, "vmem_cap": 56 << 20}


def _choose_tiling(B, E, H, num_cores, vmem_budget_bytes):
    """Pick tile_b (multiple of 128, <= 1024) from the VMEM budget and pad B."""
    # Resident (single-buffered) weights: W1 bf16 + b1/w2 f32 + slack.
    resident = E * H * 2 + 2 * H * 4 + (1 << 20)
    stream_budget = max(1 << 20, vmem_budget_bytes - resident)
    # x1 + x2, double-buffered, bf16.
    bytes_per_row = 2 * 2 * E * 2
    cap_rows = max(128, ((stream_budget // bytes_per_row) // 128) * 128)

    b_ceil = (-(-B // 128)) * 128
    tile_b = min(1024, cap_rows, b_ceil)
    if num_cores > 1:
        # Keep >= 2 steps per TensorCore so each core still overlaps DMA/compute.
        target_steps = 2 * num_cores
        while tile_b > 128 and (-(-b_ceil // tile_b)) < target_steps:
            tile_b -= 128
    b_pad = (-(-B // tile_b)) * tile_b
    return tile_b, b_pad


def _resident_spec(shape):
    """BlockSpec for a grid-invariant operand: fetch once, single buffer."""
    index_map = lambda i: (0,) * len(shape)
    try:
        return pl.BlockSpec(shape, index_map, pipeline_mode=pl.Buffered(1))
    except (TypeError, AttributeError):
        # Older jax without pipeline_mode/Buffered: fall back to default spec.
        return pl.BlockSpec(shape, index_map)


def mlp_head(x1, x2, w1, b1, w2, b2, *, tile_b=None):
    """x1, x2: (B, E);  w1: (E, H) pre-transposed Linear weight;  b1: (1, H);
    w2: (1, H) Linear(H->1) weight as a row;  b2: (1, 1).  Returns (B, 1) f32."""
    B, E = x1.shape
    H = w1.shape[1]

    # Enforce the dtypes the kernel is tuned for (bf16 HBM streaming).
    x1 = x1.astype(jnp.bfloat16)
    x2 = x2.astype(jnp.bfloat16)
    w1 = w1.astype(jnp.bfloat16)
    b1 = b1.reshape(1, H).astype(jnp.float32)
    w2 = w2.reshape(1, H).astype(jnp.float32)
    b2 = b2.reshape(1, 1).astype(jnp.float32)

    gen = _tpu_generation_defaults()
    if tile_b is None:
        tile_b, b_pad = _choose_tiling(B, E, H, gen["num_cores"], gen["vmem_budget"])
    else:
        assert tile_b % 128 == 0, tile_b
        b_pad = (-(-B // tile_b)) * tile_b

    if b_pad != B:
        pad = b_pad - B
        x1 = jnp.pad(x1, ((0, pad), (0, 0)))
        x2 = jnp.pad(x2, ((0, pad), (0, 0)))

    # VMEM limit from actual buffer bytes + margin, capped per generation.
    needed_vmem = (4 * tile_b * E * 2      # x1/x2: 2 arrays x 2 buffers, bf16
                   + E * H * 2             # W1: single-buffered bf16
                   + 2 * H * 4             # b1, w2: f32
                   + 2 * tile_b * 4)       # output blocks: double-buffered f32
    vmem_limit = int(min(gen["vmem_cap"], max(32 << 20, needed_vmem + (16 << 20))))

    grid = (b_pad // tile_b,)
    out = pl.pallas_call(
        mlp_head_kernel,
        out_shape=jax.ShapeDtypeStruct((b_pad, 1), jnp.float32),
        grid_spec=pltpu.PrefetchScalarGridSpec(
            num_scalar_prefetch=0,
            grid=grid,
            in_specs=[
                pl.BlockSpec((tile_b, E), lambda i: (i, 0)),   # x1 (bf16, streamed)
                pl.BlockSpec((tile_b, E), lambda i: (i, 0)),   # x2 (bf16, streamed)
                _resident_spec((E, H)),                        # W1 (bf16, resident)
                _resident_spec((1, H)),                        # b1 (f32, resident)
                _resident_spec((1, H)),                        # w2 row (f32, resident)
                pl.BlockSpec(memory_space=pltpu.MemorySpace.SMEM),  # b2 scalar
            ],
            out_specs=pl.BlockSpec((tile_b, 1), lambda i: (i, 0)),
        ),
        compiler_params=pltpu.CompilerParams(
            dimension_semantics=("parallel",),
            vmem_limit_bytes=vmem_limit,
        ),
    )(x1, x2, w1, b1, w2, b2)
    return out[:B]


def reference(x1, x2, w1, b1, w2, b2):
    """Pure-JAX f32 reference matching the PyTorch module (eval mode)."""
    def mish(v):
        return v * jnp.tanh(jax.nn.softplus(v))
    x = (x1 + x2) * 0.5
    h = mish(x)
    h = h @ w1 + b1
    h = mish(mish(h))
    return h @ w2.T + b2


if __name__ == "__main__":
    # Small shapes: batch=32, embedding_size=128 (lane-full E); H = E // 2.
    B, E = 32, 128
    H = E // 2

    key = jax.random.PRNGKey(0)
    k_x1, k_x2, k_w1, k_b1, k_w2, k_b2 = jax.random.split(key, 6)

    x1 = jax.random.normal(k_x1, (B, E), dtype=jnp.float32)
    x2 = jax.random.normal(k_x2, (B, E), dtype=jnp.float32)

    # Linear weights stored pre-transposed: W1 (E, H); W2 as a (1, H) row.
    w1 = jax.random.normal(k_w1, (E, H), dtype=jnp.float32) * (1.0 / jnp.sqrt(E))
    b1 = jax.random.normal(k_b1, (1, H), dtype=jnp.float32) * 0.01
    w2 = jax.random.normal(k_w2, (1, H), dtype=jnp.float32) * (1.0 / jnp.sqrt(H))
    b2 = jax.random.normal(k_b2, (1, 1), dtype=jnp.float32) * 0.01

    out = mlp_head(x1, x2, w1, b1, w2, b2)
    out = jax.block_until_ready(out)

    ref = reference(x1, x2, w1, b1, w2, b2)
    assert out.shape == (B, 1), out.shape
    # bf16 streaming + approx reciprocal vs f32 reference -> relaxed tolerance.
    assert jnp.allclose(out, ref, atol=5e-2, rtol=5e-2), (out, ref)

    print("KERNEL_OK")
</pallas_src>

<mosaic_0001>
module attributes {stable_mosaic.version = 11 : i64} {
  func.func @mlp_head_kernel(%arg0: i32, %arg1: memref<128x128xbf16, #tpu.memory_space<vmem>>, %arg2: memref<128x128xbf16, #tpu.memory_space<vmem>>, %arg3: memref<128x64xbf16, #tpu.memory_space<vmem>>, %arg4: memref<1x64xf32, #tpu.memory_space<vmem>>, %arg5: memref<1x64xf32, #tpu.memory_space<vmem>>, %arg6: memref<1x1xf32, #tpu.memory_space<smem>>, %arg7: memref<128x1xf32, #tpu.memory_space<vmem>>) attributes {dimension_semantics = [#tpu.dimension_semantics<parallel>], iteration_bounds = array<i64: 1>, scalar_prefetch = 0 : i64, scratch_operands = 0 : i64, tpu.core_type = #tpu.core_type<tc>, window_params = [{transform_indices = @transform_0, window_bounds = array<i64: 128, 128>}, {transform_indices = @transform_1, window_bounds = array<i64: 128, 128>}, {pipeline_mode = #tpu.pipeline_mode<synchronous>, transform_indices = @transform_2, window_bounds = array<i64: 128, 64>}, {pipeline_mode = #tpu.pipeline_mode<synchronous>, transform_indices = @transform_3, window_bounds = array<i64: 1, 64>}, {pipeline_mode = #tpu.pipeline_mode<synchronous>, transform_indices = @transform_4, window_bounds = array<i64: 1, 64>}, {transform_indices = @transform_5, window_bounds = array<i64: 1, 1>}, {transform_indices = @transform_6, window_bounds = array<i64: 128, 1>}]} {
    %c0 = arith.constant 0 : index
    %c0_0 = arith.constant 0 : index
    %0 = vector.load %arg1[%c0, %c0_0] : memref<128x128xbf16, #tpu.memory_space<vmem>>, vector<128x128xbf16>
    %1 = arith.extf %0 : vector<128x128xbf16> to vector<128x128xf32>
    %c0_1 = arith.constant 0 : index
    %c0_2 = arith.constant 0 : index
    %2 = vector.load %arg2[%c0_1, %c0_2] : memref<128x128xbf16, #tpu.memory_space<vmem>>, vector<128x128xbf16>
    %3 = arith.extf %2 : vector<128x128xbf16> to vector<128x128xf32>
    %4 = arith.addf %1, %3 : vector<128x128xf32>
    %cst = arith.constant 5.000000e-01 : f32
    %5 = vector.broadcast %cst : f32 to vector<128x128xf32>
    %6 = arith.mulf %4, %5 : vector<128x128xf32>
    %7 = math.absf %6 : vector<128x128xf32>
    %cst_3 = arith.constant 0.000000e+00 : f32
    %8 = vector.broadcast %cst_3 : f32 to vector<128x128xf32>
    %9 = arith.subf %8, %7 : vector<128x128xf32>
    %10 = math.exp %9 : vector<128x128xf32>
    %11 = arith.mulf %10, %10 : vector<128x128xf32>
    %cst_4 = arith.constant 0.000000e+00 : f32
    %12 = vector.broadcast %cst_4 : f32 to vector<128x128xf32>
    %13 = arith.cmpf oge, %6, %12 : vector<128x128xf32>
    %cst_5 = arith.constant 2.000000e+00 : f32
    %14 = vector.broadcast %cst_5 : f32 to vector<128x128xf32>
    %15 = arith.mulf %14, %10 : vector<128x128xf32>
    %cst_6 = arith.constant 1.000000e+00 : f32
    %16 = vector.broadcast %cst_6 : f32 to vector<128x128xf32>
    %17 = arith.addf %16, %15 : vector<128x128xf32>
    %cst_7 = arith.constant 2.000000e+00 : f32
    %18 = vector.broadcast %cst_7 : f32 to vector<128x128xf32>
    %19 = arith.mulf %18, %10 : vector<128x128xf32>
    %20 = arith.addf %11, %19 : vector<128x128xf32>
    %21 = arith.select %13, %17, %20 : vector<128x128xi1>, vector<128x128xf32>
    %cst_8 = arith.constant 2.000000e+00 : f32
    %22 = vector.broadcast %cst_8 : f32 to vector<128x128xf32>
    %23 = arith.mulf %22, %11 : vector<128x128xf32>
    %cst_9 = arith.constant 2.000000e+00 : f32
    %24 = vector.broadcast %cst_9 : f32 to vector<128x128xf32>
    %25 = arith.mulf %24, %10 : vector<128x128xf32>
    %26 = arith.addf %23, %25 : vector<128x128xf32>
    %cst_10 = arith.constant 1.000000e+00 : f32
    %27 = vector.broadcast %cst_10 : f32 to vector<128x128xf32>
    %28 = arith.addf %26, %27 : vector<128x128xf32>
    %cst_11 = arith.constant 2.000000e+00 : f32
    %29 = vector.broadcast %cst_11 : f32 to vector<128x128xf32>
    %30 = arith.mulf %29, %10 : vector<128x128xf32>
    %31 = arith.addf %11, %30 : vector<128x128xf32>
    %cst_12 = arith.constant 2.000000e+00 : f32
    %32 = vector.broadcast %cst_12 : f32 to vector<128x128xf32>
    %33 = arith.addf %31, %32 : vector<128x128xf32>
    %34 = arith.select %13, %28, %33 : vector<128x128xi1>, vector<128x128xf32>
    %35 = tpu.reciprocal %34 {approx = true} : vector<128x128xf32> -> vector<128x128xf32>
    %36 = arith.mulf %21, %35 : vector<128x128xf32>
    %37 = arith.mulf %6, %36 : vector<128x128xf32>
    %38 = arith.truncf %37 : vector<128x128xf32> to vector<128x128xbf16>
    %c0_13 = arith.constant 0 : index
    %c0_14 = arith.constant 0 : index
    %39 = vector.load %arg3[%c0_13, %c0_14] : memref<128x64xbf16, #tpu.memory_space<vmem>>, vector<128x64xbf16>
    %cst_15 = arith.constant dense<0.000000e+00> : vector<128x64xf32>
    %40 = tpu.matmul %38, %39, %cst_15 {dimension_numbers = #tpu.dot_dimension_numbers<[1], [0], [0], [1], [0, 0, 1, 1], [], []>} : vector<128x128xbf16>, vector<128x64xbf16>, vector<128x64xf32> -> vector<128x64xf32>
    %c0_16 = arith.constant 0 : index
    %c0_17 = arith.constant 0 : index
    %41 = vector.load %arg4[%c0_16, %c0_17] : memref<1x64xf32, #tpu.memory_space<vmem>>, vector<1x64xf32>
    %42 = vector.broadcast %41 : vector<1x64xf32> to vector<128x64xf32>
    %43 = arith.addf %40, %42 : vector<128x64xf32>
    %44 = math.absf %43 : vector<128x64xf32>
    %cst_18 = arith.constant 0.000000e+00 : f32
    %45 = vector.broadcast %cst_18 : f32 to vector<128x64xf32>
    %46 = arith.subf %45, %44 : vector<128x64xf32>
    %47 = math.exp %46 : vector<128x64xf32>
    %48 = arith.mulf %47, %47 : vector<128x64xf32>
    %cst_19 = arith.constant 0.000000e+00 : f32
    %49 = vector.broadcast %cst_19 : f32 to vector<128x64xf32>
    %50 = arith.cmpf oge, %43, %49 : vector<128x64xf32>
    %cst_20 = arith.constant 2.000000e+00 : f32
    %51 = vector.broadcast %cst_20 : f32 to vector<128x64xf32>
    %52 = arith.mulf %51, %47 : vector<128x64xf32>
    %cst_21 = arith.constant 1.000000e+00 : f32
    %53 = vector.broadcast %cst_21 : f32 to vector<128x64xf32>
    %54 = arith.addf %53, %52 : vector<128x64xf32>
    %cst_22 = arith.constant 2.000000e+00 : f32
    %55 = vector.broadcast %cst_22 : f32 to vector<128x64xf32>
    %56 = arith.mulf %55, %47 : vector<128x64xf32>
    %57 = arith.addf %48, %56 : vector<128x64xf32>
    %58 = arith.select %50, %54, %57 : vector<128x64xi1>, vector<128x64xf32>
    %cst_23 = arith.constant 2.000000e+00 : f32
    %59 = vector.broadcast %cst_23 : f32 to vector<128x64xf32>
    %60 = arith.mulf %59, %48 : vector<128x64xf32>
    %cst_24 = arith.constant 2.000000e+00 : f32
    %61 = vector.broadcast %cst_24 : f32 to vector<128x64xf32>
    %62 = arith.mulf %61, %47 : vector<128x64xf32>
    %63 = arith.addf %60, %62 : vector<128x64xf32>
    %cst_25 = arith.constant 1.000000e+00 : f32
    %64 = vector.broadcast %cst_25 : f32 to vector<128x64xf32>
    %65 = arith.addf %63, %64 : vector<128x64xf32>
    %cst_26 = arith.constant 2.000000e+00 : f32
    %66 = vector.broadcast %cst_26 : f32 to vector<128x64xf32>
    %67 = arith.mulf %66, %47 : vector<128x64xf32>
    %68 = arith.addf %48, %67 : vector<128x64xf32>
    %cst_27 = arith.constant 2.000000e+00 : f32
    %69 = vector.broadcast %cst_27 : f32 to vector<128x64xf32>
    %70 = arith.addf %68, %69 : vector<128x64xf32>
    %71 = arith.select %50, %65, %70 : vector<128x64xi1>, vector<128x64xf32>
    %72 = tpu.reciprocal %71 {approx = true} : vector<128x64xf32> -> vector<128x64xf32>
    %73 = arith.mulf %58, %72 : vector<128x64xf32>
    %74 = arith.mulf %43, %73 : vector<128x64xf32>
    %75 = math.absf %74 : vector<128x64xf32>
    %cst_28 = arith.constant 0.000000e+00 : f32
    %76 = vector.broadcast %cst_28 : f32 to vector<128x64xf32>
    %77 = arith.subf %76, %75 : vector<128x64xf32>
    %78 = math.exp %77 : vector<128x64xf32>
    %79 = arith.mulf %78, %78 : vector<128x64xf32>
    %cst_29 = arith.constant 0.000000e+00 : f32
    %80 = vector.broadcast %cst_29 : f32 to vector<128x64xf32>
    %81 = arith.cmpf oge, %74, %80 : vector<128x64xf32>
    %cst_30 = arith.constant 2.000000e+00 : f32
    %82 = vector.broadcast %cst_30 : f32 to vector<128x64xf32>
    %83 = arith.mulf %82, %78 : vector<128x64xf32>
    %cst_31 = arith.constant 1.000000e+00 : f32
    %84 = vector.broadcast %cst_31 : f32 to vector<128x64xf32>
    %85 = arith.addf %84, %83 : vector<128x64xf32>
    %cst_32 = arith.constant 2.000000e+00 : f32
    %86 = vector.broadcast %cst_32 : f32 to vector<128x64xf32>
    %87 = arith.mulf %86, %78 : vector<128x64xf32>
    %88 = arith.addf %79, %87 : vector<128x64xf32>
    %89 = arith.select %81, %85, %88 : vector<128x64xi1>, vector<128x64xf32>
    %cst_33 = arith.constant 2.000000e+00 : f32
    %90 = vector.broadcast %cst_33 : f32 to vector<128x64xf32>
    %91 = arith.mulf %90, %79 : vector<128x64xf32>
    %cst_34 = arith.constant 2.000000e+00 : f32
    %92 = vector.broadcast %cst_34 : f32 to vector<128x64xf32>
    %93 = arith.mulf %92, %78 : vector<128x64xf32>
    %94 = arith.addf %91, %93 : vector<128x64xf32>
    %cst_35 = arith.constant 1.000000e+00 : f32
    %95 = vector.broadcast %cst_35 : f32 to vector<128x64xf32>
    %96 = arith.addf %94, %95 : vector<128x64xf32>
    %cst_36 = arith.constant 2.000000e+00 : f32
    %97 = vector.broadcast %cst_36 : f32 to vector<128x64xf32>
    %98 = arith.mulf %97, %78 : vector<128x64xf32>
    %99 = arith.addf %79, %98 : vector<128x64xf32>
    %cst_37 = arith.constant 2.000000e+00 : f32
    %100 = vector.broadcast %cst_37 : f32 to vector<128x64xf32>
    %101 = arith.addf %99, %100 : vector<128x64xf32>
    %102 = arith.select %81, %96, %101 : vector<128x64xi1>, vector<128x64xf32>
    %103 = tpu.reciprocal %102 {approx = true} : vector<128x64xf32> -> vector<128x64xf32>
    %104 = arith.mulf %89, %103 : vector<128x64xf32>
    %105 = arith.mulf %74, %104 : vector<128x64xf32>
    %c0_38 = arith.constant 0 : index
    %c0_39 = arith.constant 0 : index
    %106 = vector.load %arg5[%c0_38, %c0_39] : memref<1x64xf32, #tpu.memory_space<vmem>>, vector<1x64xf32>
    %107 = vector.broadcast %106 : vector<1x64xf32> to vector<128x64xf32>
    %108 = arith.mulf %105, %107 : vector<128x64xf32>
    %cst_40 = arith.constant dense<0.000000e+00> : vector<128xf32>
    %109 = vector.multi_reduction <add>, %108, %cst_40 [1] : vector<128x64xf32> to vector<128xf32>
    %110 = vector.shape_cast %109 : vector<128xf32> to vector<128x1xf32>
    %c0_41 = arith.constant 0 : index
    %c0_42 = arith.constant 0 : index
    %111 = memref.load %arg6[%c0_41, %c0_42] : memref<1x1xf32, #tpu.memory_space<smem>>
    %112 = vector.broadcast %111 : f32 to vector<128x1xf32>
    %113 = arith.addf %110, %112 : vector<128x1xf32>
    %c0_43 = arith.constant 0 : index
    %c0_44 = arith.constant 0 : index
    %114 = vector.load %arg7[%c0_43, %c0_44] : memref<128x1xf32, #tpu.memory_space<vmem>>, vector<128x1xf32>
    tpu.vector_store %arg7[%c0_43, %c0_44], %113 {strides = array<i32>} : memref<128x1xf32, #tpu.memory_space<vmem>>, vector<128x1xf32>,
    return
  }
  func.func @transform_0(%arg0: i32) -> (i32, i32) {
    %c0_i32 = arith.constant 0 : i32
    %c0_i32_0 = arith.constant 0 : i32
    return %arg0, %c0_i32 : i32, i32
  }
  func.func @transform_1(%arg0: i32) -> (i32, i32) {
    %c0_i32 = arith.constant 0 : i32
    %c0_i32_0 = arith.constant 0 : i32
    return %arg0, %c0_i32 : i32, i32
  }
  func.func @transform_2(%arg0: i32) -> (i32, i32) {
    %c0_i32 = arith.constant 0 : i32
    %c0_i32_0 = arith.constant 0 : i32
    %c0_i32_1 = arith.constant 0 : i32
    return %c0_i32, %c0_i32_0 : i32, i32
  }
  func.func @transform_3(%arg0: i32) -> (i32, i32) {
    %c0_i32 = arith.constant 0 : i32
    %c0_i32_0 = arith.constant 0 : i32
    %c0_i32_1 = arith.constant 0 : i32
    return %c0_i32, %c0_i32_0 : i32, i32
  }
  func.func @transform_4(%arg0: i32) -> (i32, i32) {
    %c0_i32 = arith.constant 0 : i32
    %c0_i32_0 = arith.constant 0 : i32
    %c0_i32_1 = arith.constant 0 : i32
    return %c0_i32, %c0_i32_0 : i32, i32
  }
  func.func @transform_5(%arg0: i32) -> (i32, i32) {
    %c0_i32 = arith.constant 0 : i32
    %c0_i32_0 = arith.constant 0 : i32
    %c0_i32_1 = arith.constant 0 : i32
    return %c0_i32, %c0_i32_0 : i32, i32
  }
  func.func @transform_6(%arg0: i32) -> (i32, i32) {
    %c0_i32 = arith.constant 0 : i32
    %c0_i32_0 = arith.constant 0 : i32
    return %arg0, %c0_i32 : i32, i32
  }
}

</mosaic_0001>

<llo_original>
// kernel: tpu_custom_call.1
$region0: #{tpu_custom_call.1}
  #allocation0 [shape = 'u32[]', space=smem, size = 0x4, offset = 0x4, fixed_abs, tag = 'smem constant byte address 0x4 - core index']
  #allocation1 [shape = 'u32[144,128]{1,0:T(1,128)}', space=vmem, size = 0x12000, scoped, tag = 'internal scratch']
  #allocation2 [shape = 'f32[1,1]{1,0:T(1,128)S(6)}', space=smem, size = 0x200, scoped, tag = 'scoped memory for tpu_custom_call.1']
  %s0 = inlined_call_operand.vmem [shape: bf16[128,128], index: 0, kind: input, shape index: {}]
  %s1 = inlined_call_operand.hbm [shape: bf16[128,128], index: 1, kind: input, shape index: {}]
  %s2 = inlined_call_operand.vmem [shape: bf16[128,64], index: 2, kind: input, shape index: {}]
  %s3 = inlined_call_operand.vmem [shape: f32[1,64], index: 3, kind: input, shape index: {}]
  %s4 = inlined_call_operand.vmem [shape: f32[1,64], index: 4, kind: input, shape index: {}]
  %s5 = inlined_call_operand.<no memory space> [shape: f32[1,1], index: 5, kind: input, shape index: {}]
  %s6 = inlined_call_operand.vmem [shape: f32[128,1], index: 6, kind: output, shape index: {}]
  %s7 = sld [smem:[#allocation0]]
  $region38: #{tpu_custom_call.1} parent=0
    _
  %s9 = ssub.s32 1, %s7
  %s10 = scalar_select 0, %s9, %s7
  %11 = sst [smem:[#allocation2]] %s5
  $region1: #{tpu_custom_call.1} parent=0
    #allocation3 [shape = 'u8[32768]{0}', space=vmem, size = 0x8000, scoped, tag = 'input window, operand 1, single buffered']
    #allocation4 [shape = 's32[1]{0}', space=sflag, size = 0x4, scoped, tag = 'scoped memory for tpu_custom_call.1']
    %12 = vsyncpa [#allocation4], 0
    // Predicated region
    $region2: #{tpu_custom_call.1} parent=1 // pred_check
      _
    $region3: #{tpu_custom_call.1} parent=1 // pred_check_branch
      %14 = sbr.rel (0) target = $region5
    $region4: #{tpu_custom_call.1} parent=1 // pred_region
      _
    $region5: #{tpu_custom_call.1} parent=1 // pred_fallthru
      _
    // Predicated region
    $region6: #{tpu_custom_call.1} parent=1 // pred_check
      _
    $region7: #{tpu_custom_call.1} parent=1 // pred_check_branch
      %16 = sbr.rel (0) target = $region9
    $region8: #{tpu_custom_call.1} parent=1 // pred_region
      %s18 = ssub.s32 1024, 1024
      %19 = vsyncadd [#allocation4], %s18
      %s20 = sshll.u32 [#allocation3], 4
      %s21 = int_to_ptr.vmem [resolvable:$true] %s20
      %26 = dma.hbm_to_vmem [thread:$0]  %s1, 1024, %s21, [#allocation4], 64, 64, 4
    $region9: #{tpu_custom_call.1} parent=1 // pred_fallthru
      _
    // Predicated region
    $region10: #{tpu_custom_call.1} parent=1 // pred_check
      _
    $region11: #{tpu_custom_call.1} parent=1 // pred_check_branch
      %28 = sbr.rel (0) target = $region13
    $region12: #{tpu_custom_call.1} parent=1 // pred_region
      _
    $region13: #{tpu_custom_call.1} parent=1 // pred_fallthru
      _
    // Predicated region
    $region14: #{tpu_custom_call.1} parent=1 // pred_check
      _
    $region15: #{tpu_custom_call.1} parent=1 // pred_check_branch
      %30 = sbr.rel (0) target = $region17
    $region16: #{tpu_custom_call.1} parent=1 // pred_region
      _
    $region17: #{tpu_custom_call.1} parent=1 // pred_fallthru
      _
    // Predicated region
    $region18: #{tpu_custom_call.1} parent=1 // pred_check
      _
    $region19: #{tpu_custom_call.1} parent=1 // pred_check_branch
      %32 = sbr.rel (0) target = $region21
    $region20: #{tpu_custom_call.1} parent=1 // pred_region
      _
    $region21: #{tpu_custom_call.1} parent=1 // pred_fallthru
      _
    // Predicated region
    $region22: #{tpu_custom_call.1} parent=1 // pred_check
      _
    $region23: #{tpu_custom_call.1} parent=1 // pred_check_branch
      %34 = sbr.rel (0) target = $region25
    $region24: #{tpu_custom_call.1} parent=1 // pred_region
      _
    $region25: #{tpu_custom_call.1} parent=1 // pred_fallthru
      _
    // Predicated region
    $region26: #{tpu_custom_call.1} parent=1 // pred_check
      _
    $region27: #{tpu_custom_call.1} parent=1 // pred_check_branch
      %36 = sbr.rel (0) target = $region29
    $region28: #{tpu_custom_call.1} parent=1 // pred_region
      %37 = dma.done [#allocation4], 1024
    $region29: #{tpu_custom_call.1} parent=1 // pred_fallthru
      _
    %v39 = vld [vmem:[%s0] sm:$0xf]
    %v40 = vld [vmem:[%s0 + $0x4] sm:$0xf]
    %v41 = vld [vmem:[%s0 + $0x8] sm:$0xf]
    %v42 = vld [vmem:[%s0 + $0xc] sm:$0xf]
    %v43 = vld [vmem:[%s0 + $0x10] sm:$0xf]
    %v44 = vld [vmem:[%s0 + $0x14] sm:$0xf]
    %v45 = vld [vmem:[%s0 + $0x18] sm:$0xf]
    %v46 = vld [vmem:[%s0 + $0x1c] sm:$0xf]
    %v47 = vld [vmem:[%s0 + $0x20] sm:$0xf]
    %v48 = vld [vmem:[%s0 + $0x24] sm:$0xf]
    %v49 = vld [vmem:[%s0 + $0x28] sm:$0xf]
    %v50 = vld [vmem:[%s0 + $0x2c] sm:$0xf]
    %v51 = vld [vmem:[%s0 + $0x30] sm:$0xf]
    %v52 = vld [vmem:[%s0 + $0x34] sm:$0xf]
    %v53 = vld [vmem:[%s0 + $0x38] sm:$0xf]
    %v54 = vld [vmem:[%s0 + $0x3c] sm:$0xf]
    %v55 = vunpack.c.l.bf16 %v39
    %v56 = vunpack.c.l.bf16 %v40
    %v57 = vunpack.c.l.bf16 %v41
    %v58 = vunpack.c.l.bf16 %v42
    %v59 = vunpack.c.l.bf16 %v43
    %v60 = vunpack.c.l.bf16 %v44
    %v61 = vunpack.c.l.bf16 %v45
    %v62 = vunpack.c.l.bf16 %v46
    %v63 = vunpack.c.l.bf16 %v47
    %v64 = vunpack.c.l.bf16 %v48
    %v65 = vunpack.c.l.bf16 %v49
    %v66 = vunpack.c.l.bf16 %v50
    %v67 = vunpack.c.l.bf16 %v51
    %v68 = vunpack.c.l.bf16 %v52
    %v69 = vunpack.c.l.bf16 %v53
    %v70 = vunpack.c.l.bf16 %v54
    %v71 = vld [vmem:[#allocation3] sm:$0xf]
    %v72 = vld [vmem:[#allocation3 + $0x4] sm:$0xf]
    %v73 = vld [vmem:[#allocation3 + $0x8] sm:$0xf]
    %v74 = vld [vmem:[#allocation3 + $0xc] sm:$0xf]
    %v75 = vld [vmem:[#allocation3 + $0x10] sm:$0xf]
    %v76 = vld [vmem:[#allocation3 + $0x14] sm:$0xf]
    %v77 = vld [vmem:[#allocation3 + $0x18] sm:$0xf]
    %v78 = vld [vmem:[#allocation3 + $0x1c] sm:$0xf]
    %v79 = vld [vmem:[#allocation3 + $0x20] sm:$0xf]
    %v80 = vld [vmem:[#allocation3 + $0x24] sm:$0xf]
    %v81 = vld [vmem:[#allocation3 + $0x28] sm:$0xf]
    %v82 = vld [vmem:[#allocation3 + $0x2c] sm:$0xf]
    %v83 = vld [vmem:[#allocation3 + $0x30] sm:$0xf]
    %v84 = vld [vmem:[#allocation3 + $0x34] sm:$0xf]
    %v85 = vld [vmem:[#allocation3 + $0x38] sm:$0xf]
    %v86 = vld [vmem:[#allocation3 + $0x3c] sm:$0xf]
    %v87 = vunpack.c.l.bf16 %v71
    %v88 = vunpack.c.l.bf16 %v72
    %v89 = vunpack.c.l.bf16 %v73
    %v90 = vunpack.c.l.bf16 %v74
    %v91 = vunpack.c.l.bf16 %v75
    %v92 = vunpack.c.l.bf16 %v76
    %v93 = vunpack.c.l.bf16 %v77
    %v94 = vunpack.c.l.bf16 %v78
    %v95 = vunpack.c.l.bf16 %v79
    %v96 = vunpack.c.l.bf16 %v80
    %v97 = vunpack.c.l.bf16 %v81
    %v98 = vunpack.c.l.bf16 %v82
    %v99 = vunpack.c.l.bf16 %v83
    %v100 = vunpack.c.l.bf16 %v84
    %v101 = vunpack.c.l.bf16 %v85
    %v102 = vunpack.c.l.bf16 %v86
    %v103 = vadd.f32 %v55, %v87
    %v104 = vadd.f32 %v56, %v88
    %v105 = vadd.f32 %v57, %v89
    %v106 = vadd.f32 %v58, %v90
    %v107 = vadd.f32 %v59, %v91
    %v108 = vadd.f32 %v60, %v92
    %v109 = vadd.f32 %v61, %v93
    %v110 = vadd.f32 %v62, %v94
    %v111 = vadd.f32 %v63, %v95
    %v112 = vadd.f32 %v64, %v96
    %v113 = vadd.f32 %v65, %v97
    %v114 = vadd.f32 %v66, %v98
    %v115 = vadd.f32 %v67, %v99
    %v116 = vadd.f32 %v68, %v100
    %v117 = vadd.f32 %v69, %v101
    %v118 = vadd.f32 %v70, %v102
    %v119 = vmul.f32 %v103, 0.5
    %v120 = vmul.f32 %v104, 0.5
    %v121 = vmul.f32 %v105, 0.5
    %v122 = vmul.f32 %v106, 0.5
    %v123 = vmul.f32 %v107, 0.5
    %v124 = vmul.f32 %v108, 0.5
    %v125 = vmul.f32 %v109, 0.5
    %v126 = vmul.f32 %v110, 0.5
    %v127 = vmul.f32 %v111, 0.5
    %v128 = vmul.f32 %v112, 0.5
    %v129 = vmul.f32 %v113, 0.5
    %v130 = vmul.f32 %v114, 0.5
    %v131 = vmul.f32 %v115, 0.5
    %v132 = vmul.f32 %v116, 0.5
    %v133 = vmul.f32 %v117, 0.5
    %v134 = vmul.f32 %v118, 0.5
    %v135 = vand.u32 2147483647, %v119
    %v136 = vand.u32 2147483647, %v120
    %v137 = vand.u32 2147483647, %v121
    %v138 = vand.u32 2147483647, %v122
    %v139 = vand.u32 2147483647, %v123
    %v140 = vand.u32 2147483647, %v124
    %v141 = vand.u32 2147483647, %v125
    %v142 = vand.u32 2147483647, %v126
    %v143 = vand.u32 2147483647, %v127
    %v144 = vand.u32 2147483647, %v128
    %v145 = vand.u32 2147483647, %v129
    %v146 = vand.u32 2147483647, %v130
    %v147 = vand.u32 2147483647, %v131
    %v148 = vand.u32 2147483647, %v132
    %v149 = vand.u32 2147483647, %v133
    %v150 = vand.u32 2147483647, %v134
    %v151 = vsub.f32 0.0, %v135
    %v152 = vsub.f32 0.0, %v136
    %v153 = vsub.f32 0.0, %v137
    %v154 = vsub.f32 0.0, %v138
    %v155 = vsub.f32 0.0, %v139
    %v156 = vsub.f32 0.0, %v140
    %v157 = vsub.f32 0.0, %v141
    %v158 = vsub.f32 0.0, %v142
    %v159 = vsub.f32 0.0, %v143
    %v160 = vsub.f32 0.0, %v144
    %v161 = vsub.f32 0.0, %v145
    %v162 = vsub.f32 0.0, %v146
    %v163 = vsub.f32 0.0, %v147
    %v164 = vsub.f32 0.0, %v148
    %v165 = vsub.f32 0.0, %v149
    %v166 = vsub.f32 0.0, %v150
    %v167 = vmul.f32 %v151, 1.442695
    %v168 = vpow.pop %v167
    %v169 = vmul.f32 %v152, 1.442695
    %v170 = vpow.pop %v169
    %v171 = vmul.f32 %v153, 1.442695
    %v172 = vpow.pop %v171
    %v173 = vmul.f32 %v154, 1.442695
    %v174 = vpow.pop %v173
    %v175 = vmul.f32 %v155, 1.442695
    %v176 = vpow.pop %v175
    %v177 = vmul.f32 %v156, 1.442695
    %v178 = vpow.pop %v177
    %v179 = vmul.f32 %v157, 1.442695
    %v180 = vpow.pop %v179
    %v181 = vmul.f32 %v158, 1.442695
    %v182 = vpow.pop %v181
    %v183 = vmul.f32 %v159, 1.442695
    %v184 = vpow.pop %v183
    %v185 = vmul.f32 %v160, 1.442695
    %v186 = vpow.pop %v185
    %v187 = vmul.f32 %v161, 1.442695
    %v188 = vpow.pop %v187
    %v189 = vmul.f32 %v162, 1.442695
    %v190 = vpow.pop %v189
    %v191 = vmul.f32 %v163, 1.442695
    %v192 = vpow.pop %v191
    %v193 = vmul.f32 %v164, 1.442695
    %v194 = vpow.pop %v193
    %v195 = vmul.f32 %v165, 1.442695
    %v196 = vpow.pop %v195
    %v197 = vmul.f32 %v166, 1.442695
    %v198 = vpow.pop %v197
    %v199 = vmul.f32 %v168, %v168
    %v200 = vmul.f32 %v170, %v170
    %v201 = vmul.f32 %v172, %v172
    %v202 = vmul.f32 %v174, %v174
    %v203 = vmul.f32 %v176, %v176
    %v204 = vmul.f32 %v178, %v178
    %v205 = vmul.f32 %v180, %v180
    %v206 = vmul.f32 %v182, %v182
    %v207 = vmul.f32 %v184, %v184
    %v208 = vmul.f32 %v186, %v186
    %v209 = vmul.f32 %v188, %v188
    %v210 = vmul.f32 %v190, %v190
    %v211 = vmul.f32 %v192, %v192
    %v212 = vmul.f32 %v194, %v194
    %v213 = vmul.f32 %v196, %v196
    %v214 = vmul.f32 %v198, %v198
    %vm215 = vcmp.ge.f32.partialorder %v119, 0.0
    %vm216 = vcmp.ge.f32.partialorder %v120, 0.0
    %vm217 = vcmp.ge.f32.partialorder %v121, 0.0
    %vm218 = vcmp.ge.f32.partialorder %v122, 0.0
    %vm219 = vcmp.ge.f32.partialorder %v123, 0.0
    %vm220 = vcmp.ge.f32.partialorder %v124, 0.0
    %vm221 = vcmp.ge.f32.partialorder %v125, 0.0
    %vm222 = vcmp.ge.f32.partialorder %v126, 0.0
    %vm223 = vcmp.ge.f32.partialorder %v127, 0.0
    %vm224 = vcmp.ge.f32.partialorder %v128, 0.0
    %vm225 = vcmp.ge.f32.partialorder %v129, 0.0
    %vm226 = vcmp.ge.f32.partialorder %v130, 0.0
    %vm227 = vcmp.ge.f32.partialorder %v131, 0.0
    %vm228 = vcmp.ge.f32.partialorder %v132, 0.0
    %vm229 = vcmp.ge.f32.partialorder %v133, 0.0
    %vm230 = vcmp.ge.f32.partialorder %v134, 0.0
    %v231 = vmul.f32 %v168, 2.0
    %v232 = vmul.f32 %v170, 2.0
    %v233 = vmul.f32 %v172, 2.0
    %v234 = vmul.f32 %v174, 2.0
    %v235 = vmul.f32 %v176, 2.0
    %v236 = vmul.f32 %v178, 2.0
    %v237 = vmul.f32 %v180, 2.0
    %v238 = vmul.f32 %v182, 2.0
    %v239 = vmul.f32 %v184, 2.0
    %v240 = vmul.f32 %v186, 2.0
    %v241 = vmul.f32 %v188, 2.0
    %v242 = vmul.f32 %v190, 2.0
    %v243 = vmul.f32 %v192, 2.0
    %v244 = vmul.f32 %v194, 2.0
    %v245 = vmul.f32 %v196, 2.0
    %v246 = vmul.f32 %v198, 2.0
    %v247 = vadd.f32 %v231, 1.0
    %v248 = vadd.f32 %v232, 1.0
    %v249 = vadd.f32 %v233, 1.0
    %v250 = vadd.f32 %v234, 1.0
    %v251 = vadd.f32 %v235, 1.0
    %v252 = vadd.f32 %v236, 1.0
    %v253 = vadd.f32 %v237, 1.0
    %v254 = vadd.f32 %v238, 1.0
    %v255 = vadd.f32 %v239, 1.0
    %v256 = vadd.f32 %v240, 1.0
    %v257 = vadd.f32 %v241, 1.0
    %v258 = vadd.f32 %v242, 1.0
    %v259 = vadd.f32 %v243, 1.0
    %v260 = vadd.f32 %v244, 1.0
    %v261 = vadd.f32 %v245, 1.0
    %v262 = vadd.f32 %v246, 1.0
    %v263 = vadd.f32 %v199, %v231
    %v264 = vadd.f32 %v200, %v232
    %v265 = vadd.f32 %v201, %v233
    %v266 = vadd.f32 %v202, %v234
    %v267 = vadd.f32 %v203, %v235
    %v268 = vadd.f32 %v204, %v236
    %v269 = vadd.f32 %v205, %v237
    %v270 = vadd.f32 %v206, %v238
    %v271 = vadd.f32 %v207, %v239
    %v272 = vadd.f32 %v208, %v240
    %v273 = vadd.f32 %v209, %v241
    %v274 = vadd.f32 %v210, %v242
    %v275 = vadd.f32 %v211, %v243
    %v276 = vadd.f32 %v212, %v244
    %v277 = vadd.f32 %v213, %v245
    %v278 = vadd.f32 %v214, %v246
    %v279 = vsel %vm215, %v247, %v263
    %v280 = vsel %vm216, %v248, %v264
    %v281 = vsel %vm217, %v249, %v265
    %v282 = vsel %vm218, %v250, %v266
    %v283 = vsel %vm219, %v251, %v267
    %v284 = vsel %vm220, %v252, %v268
    %v285 = vsel %vm221, %v253, %v269
    %v286 = vsel %vm222, %v254, %v270
    %v287 = vsel %vm223, %v255, %v271
    %v288 = vsel %vm224, %v256, %v272
    %v289 = vsel %vm225, %v257, %v273
    %v290 = vsel %vm226, %v258, %v274
    %v291 = vsel %vm227, %v259, %v275
    %v292 = vsel %vm228, %v260, %v276
    %v293 = vsel %vm229, %v261, %v277
    %v294 = vsel %vm230, %v262, %v278
    %v295 = vmul.f32 %v199, 2.0
    %v296 = vmul.f32 %v200, 2.0
    %v297 = vmul.f32 %v201, 2.0
    %v298 = vmul.f32 %v202, 2.0
    %v299 = vmul.f32 %v203, 2.0
    %v300 = vmul.f32 %v204, 2.0
    %v301 = vmul.f32 %v205, 2.0
    %v302 = vmul.f32 %v206, 2.0
    %v303 = vmul.f32 %v207, 2.0
    %v304 = vmul.f32 %v208, 2.0
    %v305 = vmul.f32 %v209, 2.0
    %v306 = vmul.f32 %v210, 2.0
    %v307 = vmul.f32 %v211, 2.0
    %v308 = vmul.f32 %v212, 2.0
    %v309 = vmul.f32 %v213, 2.0
    %v310 = vmul.f32 %v214, 2.0
    %v311 = vadd.f32 %v295, %v231
    %v312 = vadd.f32 %v296, %v232
    %v313 = vadd.f32 %v297, %v233
    %v314 = vadd.f32 %v298, %v234
    %v315 = vadd.f32 %v299, %v235
    %v316 = vadd.f32 %v300, %v236
    %v317 = vadd.f32 %v301, %v237
    %v318 = vadd.f32 %v302, %v238
    %v319 = vadd.f32 %v303, %v239
    %v320 = vadd.f32 %v304, %v240
    %v321 = vadd.f32 %v305, %v241
    %v322 = vadd.f32 %v306, %v242
    %v323 = vadd.f32 %v307, %v243
    %v324 = vadd.f32 %v308, %v244
    %v325 = vadd.f32 %v309, %v245
    %v326 = vadd.f32 %v310, %v246
    %v327 = vadd.f32 %v311, 1.0
    %v328 = vadd.f32 %v312, 1.0
    %v329 = vadd.f32 %v313, 1.0
    %v330 = vadd.f32 %v314, 1.0
    %v331 = vadd.f32 %v315, 1.0
    %v332 = vadd.f32 %v316, 1.0
    %v333 = vadd.f32 %v317, 1.0
    %v334 = vadd.f32 %v318, 1.0
    %v335 = vadd.f32 %v319, 1.0
    %v336 = vadd.f32 %v320, 1.0
    %v337 = vadd.f32 %v321, 1.0
    %v338 = vadd.f32 %v322, 1.0
    %v339 = vadd.f32 %v323, 1.0
    %v340 = vadd.f32 %v324, 1.0
    %v341 = vadd.f32 %v325, 1.0
    %v342 = vadd.f32 %v326, 1.0
    %v343 = vadd.f32 %v263, 2.0
    %v344 = vadd.f32 %v264, 2.0
    %v345 = vadd.f32 %v265, 2.0
    %v346 = vadd.f32 %v266, 2.0
    %v347 = vadd.f32 %v267, 2.0
    %v348 = vadd.f32 %v268, 2.0
    %v349 = vadd.f32 %v269, 2.0
    %v350 = vadd.f32 %v270, 2.0
    %v351 = vadd.f32 %v271, 2.0
    %v352 = vadd.f32 %v272, 2.0
    %v353 = vadd.f32 %v273, 2.0
    %v354 = vadd.f32 %v274, 2.0
    %v355 = vadd.f32 %v275, 2.0
    %v356 = vadd.f32 %v276, 2.0
    %v357 = vadd.f32 %v277, 2.0
    %v358 = vadd.f32 %v278, 2.0
    %v359 = vsel %vm215, %v327, %v343
    %v360 = vsel %vm216, %v328, %v344
    %v361 = vsel %vm217, %v329, %v345
    %v362 = vsel %vm218, %v330, %v346
    %v363 = vsel %vm219, %v331, %v347
    %v364 = vsel %vm220, %v332, %v348
    %v365 = vsel %vm221, %v333, %v349
    %v366 = vsel %vm222, %v334, %v350
    %v367 = vsel %vm223, %v335, %v351
    %v368 = vsel %vm224, %v336, %v352
    %v369 = vsel %vm225, %v337, %v353
    %v370 = vsel %vm226, %v338, %v354
    %v371 = vsel %vm227, %v339, %v355
    %v372 = vsel %vm228, %v340, %v356
    %v373 = vsel %vm229, %v341, %v357
    %v374 = vsel %vm230, %v342, %v358
    %v375 = vrcp.pop %v359
    %v376 = vrcp.pop %v360
    %v377 = vrcp.pop %v361
    %v378 = vrcp.pop %v362
    %v379 = vrcp.pop %v363
    %v380 = vrcp.pop %v364
    %v381 = vrcp.pop %v365
    %v382 = vrcp.pop %v366
    %v383 = vrcp.pop %v367
    %v384 = vrcp.pop %v368
    %v385 = vrcp.pop %v369
    %v386 = vrcp.pop %v370
    %v387 = vrcp.pop %v371
    %v388 = vrcp.pop %v372
    %v389 = vrcp.pop %v373
    %v390 = vrcp.pop %v374
    %v391 = vmul.f32 %v279, %v375
    %v392 = vmul.f32 %v280, %v376
    %v393 = vmul.f32 %v281, %v377
    %v394 = vmul.f32 %v282, %v378
    %v395 = vmul.f32 %v283, %v379
    %v396 = vmul.f32 %v284, %v380
    %v397 = vmul.f32 %v285, %v381
    %v398 = vmul.f32 %v286, %v382
    %v399 = vmul.f32 %v287, %v383
    %v400 = vmul.f32 %v288, %v384
    %v401 = vmul.f32 %v289, %v385
    %v402 = vmul.f32 %v290, %v386
    %v403 = vmul.f32 %v291, %v387
    %v404 = vmul.f32 %v292, %v388
    %v405 = vmul.f32 %v293, %v389
    %v406 = vmul.f32 %v294, %v390
    %v407 = vmul.f32 %v119, %v391
    %v408 = vmul.f32 %v120, %v392
    %v409 = vmul.f32 %v121, %v393
    %v410 = vmul.f32 %v122, %v394
    %v411 = vmul.f32 %v123, %v395
    %v412 = vmul.f32 %v124, %v396
    %v413 = vmul.f32 %v125, %v397
    %v414 = vmul.f32 %v126, %v398
    %v415 = vmul.f32 %v127, %v399
    %v416 = vmul.f32 %v128, %v400
    %v417 = vmul.f32 %v129, %v401
    %v418 = vmul.f32 %v130, %v402
    %v419 = vmul.f32 %v131, %v403
    %v420 = vmul.f32 %v132, %v404
    %v421 = vmul.f32 %v133, %v405
    %v422 = vmul.f32 %v134, %v406
    %v423 = vpack.c.bf16 %v408, %v407
    %v424 = vpack.c.bf16 %v410, %v409
    %v425 = vpack.c.bf16 %v412, %v411
    %v426 = vpack.c.bf16 %v414, %v413
    %v427 = vpack.c.bf16 %v416, %v415
    %v428 = vpack.c.bf16 %v418, %v417
    %v429 = vpack.c.bf16 %v420, %v419
    %v430 = vpack.c.bf16 %v422, %v421
    %v431 = vld [vmem:[%s2] sm:$0xf]
    %v432 = vld [vmem:[%s2 + $0x4] sm:$0xf]
    %v433 = vld [vmem:[%s2 + $0x8] sm:$0xf]
    %v434 = vld [vmem:[%s2 + $0xc] sm:$0xf]
    %v435 = vld [vmem:[%s2 + $0x10] sm:$0xf]
    %v436 = vld [vmem:[%s2 + $0x14] sm:$0xf]
    %v437 = vld [vmem:[%s2 + $0x18] sm:$0xf]
    %v438 = vld [vmem:[%s2 + $0x1c] sm:$0xf]
    %v439 = vld [vmem:[%s2 + $0x20] sm:$0xf]
    %v440 = vld [vmem:[%s2 + $0x24] sm:$0xf]
    %v441 = vld [vmem:[%s2 + $0x28] sm:$0xf]
    %v442 = vld [vmem:[%s2 + $0x2c] sm:$0xf]
    %v443 = vld [vmem:[%s2 + $0x30] sm:$0xf]
    %v444 = vld [vmem:[%s2 + $0x34] sm:$0xf]
    %v445 = vld [vmem:[%s2 + $0x38] sm:$0xf]
    %v446 = vld [vmem:[%s2 + $0x3c] sm:$0xf]
    %v447 = vld [vmem:[%s3] sm:$0x1]
    %v449 = vlaneseq
    %v450 = vshrl.u32 %v449, 7
    %v451 = vsub.s32 0, %v450
    %v452 = vrot.slane %v447, %v451
    %v470 = vunpack.c.l.b16 %v431
    %v471 = vunpack.c.l.b16 %v432
    %v472 = vunpack.c.l.b16 %v433
    %v473 = vunpack.c.l.b16 %v434
    %v474 = vunpack.c.l.b16 %v435
    %v475 = vunpack.c.l.b16 %v436
    %v476 = vunpack.c.l.b16 %v437
    %v477 = vunpack.c.l.b16 %v438
    %v478 = vunpack.c.l.b16 %v439
    %v479 = vunpack.c.l.b16 %v440
    %v480 = vunpack.c.l.b16 %v441
    %v481 = vunpack.c.l.b16 %v442
    %v482 = vunpack.c.l.b16 %v443
    %v483 = vunpack.c.l.b16 %v444
    %v484 = vunpack.c.l.b16 %v445
    %v485 = vunpack.c.l.b16 %v446
    %v486 = vpack.c.b16 %v471, %v470
    %v487 = vpack.c.b16 %v473, %v472
    %v488 = vpack.c.b16 %v475, %v474
    %v489 = vpack.c.b16 %v477, %v476
    %v490 = vpack.c.b16 %v479, %v478
    %v491 = vpack.c.b16 %v481, %v480
    %v492 = vpack.c.b16 %v483, %v482
    %v493 = vpack.c.b16 %v485, %v484
    %502 = vmatprep.subr.bf16.mxu0 0
    %503 = vmatpush1.bf16.msra.mxu0 %v486
    %504 = vmatprep.subr.bf16.mxu0 0
    %505 = vmatpush1.bf16.msra.mxu0 %v487
    %506 = vmatprep.subr.bf16.mxu0 0
    %507 = vmatpush1.bf16.msra.mxu0 %v488
    %508 = vmatprep.subr.bf16.mxu0 0
    %509 = vmatpush1.bf16.msra.mxu0 %v489
    %510 = vmatprep.subr.bf16.mxu0 0
    %511 = vmatpush1.bf16.msra.mxu0 %v490
    %512 = vmatprep.subr.bf16.mxu0 0
    %513 = vmatpush1.bf16.msra.mxu0 %v491
    %514 = vmatprep.subr.bf16.mxu0 0
    %515 = vmatpush1.bf16.msra.mxu0 %v492
    %516 = vmatprep.subr.bf16.mxu0 0
    %517 = vmatpush1.bf16.msra.mxu0 %v493
    %518 = vmatprep.subr.bf16.mxu0 0
    %519 = vmatpush1.bf16.msra.mxu0 0
    %520 = vmatprep.subr.bf16.mxu0 0
    %521 = vmatpush1.bf16.msra.mxu0 0
    %522 = vmatprep.subr.bf16.mxu0 0
    %523 = vmatpush1.bf16.msra.mxu0 0
    %524 = vmatprep.subr.bf16.mxu0 0
    %525 = vmatpush1.bf16.msra.mxu0 0
    %526 = vmatprep.subr.bf16.mxu0 0
    %527 = vmatpush1.bf16.msra.mxu0 0
    %528 = vmatprep.subr.bf16.mxu0 0
    %529 = vmatpush1.bf16.msra.mxu0 0
    %530 = vmatprep.subr.bf16.mxu0 0
    %531 = vmatpush1.bf16.msra.mxu0 0
    %532 = vmatprep.subr.bf16.mxu0 0
    %533 = vmatpush1.bf16.msra.mxu0 0
    %534 = vmatprep.mubr.bf16.mxu0 0
    %535 = vmatmul.mubr.bf16.gmra.mrb[0].mxu0 %v423
    %v536 = vpop.f32.mrb[0].mxu0
    %v537 = vadd.f32 %v452, %v536
    %v538 = vpop.f32.mrb[0].mxu0
    %v539 = vpop.f32.mrb[0].mxu0
    %v540 = vadd.f32 %v452, %v539
    %v541 = vpop.f32.mrb[0].mxu0
    %542 = vmatprep.mubr.bf16.mxu0 0
    %543 = vmatmul.mubr.bf16.gmra.mrb[0].mxu0 %v424
    %v544 = vpop.f32.mrb[0].mxu0
    %v545 = vadd.f32 %v452, %v544
    %v546 = vpop.f32.mrb[0].mxu0
    %v547 = vpop.f32.mrb[0].mxu0
    %v548 = vadd.f32 %v452, %v547
    %v549 = vpop.f32.mrb[0].mxu0
    %550 = vmatprep.mubr.bf16.mxu0 0
    %551 = vmatmul.mubr.bf16.gmra.mrb[0].mxu0 %v425
    %v552 = vpop.f32.mrb[0].mxu0
    %v553 = vadd.f32 %v452, %v552
    %v554 = vpop.f32.mrb[0].mxu0
    %v555 = vpop.f32.mrb[0].mxu0
    %v556 = vadd.f32 %v452, %v555
    %v557 = vpop.f32.mrb[0].mxu0
    %558 = vmatprep.mubr.bf16.mxu0 0
    %559 = vmatmul.mubr.bf16.gmra.mrb[0].mxu0 %v426
    %v560 = vpop.f32.mrb[0].mxu0
    %v561 = vadd.f32 %v452, %v560
    %v562 = vpop.f32.mrb[0].mxu0
    %v563 = vpop.f32.mrb[0].mxu0
    %v564 = vadd.f32 %v452, %v563
    %v565 = vpop.f32.mrb[0].mxu0
    %566 = vmatprep.mubr.bf16.mxu0 0
    %567 = vmatmul.mubr.bf16.gmra.mrb[0].mxu0 %v427
    %v568 = vpop.f32.mrb[0].mxu0
    %v569 = vadd.f32 %v452, %v568
    %v570 = vpop.f32.mrb[0].mxu0
    %v571 = vpop.f32.mrb[0].mxu0
    %v572 = vadd.f32 %v452, %v571
    %v573 = vpop.f32.mrb[0].mxu0
    %574 = vmatprep.mubr.bf16.mxu0 0
    %575 = vmatmul.mubr.bf16.gmra.mrb[0].mxu0 %v428
    %v576 = vpop.f32.mrb[0].mxu0
    %v577 = vadd.f32 %v452, %v576
    %v578 = vpop.f32.mrb[0].mxu0
    %v579 = vpop.f32.mrb[0].mxu0
    %v580 = vadd.f32 %v452, %v579
    %v581 = vpop.f32.mrb[0].mxu0
    %582 = vmatprep.mubr.bf16.mxu0 0
    %583 = vmatmul.mubr.bf16.gmra.mrb[0].mxu0 %v429
    %v584 = vpop.f32.mrb[0].mxu0
    %v585 = vadd.f32 %v452, %v584
    %v586 = vpop.f32.mrb[0].mxu0
    %v587 = vpop.f32.mrb[0].mxu0
    %v588 = vadd.f32 %v452, %v587
    %v589 = vpop.f32.mrb[0].mxu0
    %590 = vmatprep.mubr.bf16.mxu0 0
    %591 = vmatmul.mubr.bf16.gmra.mrb[0].mxu0 %v430
    %v592 = vpop.f32.mrb[0].mxu0
    %v593 = vadd.f32 %v452, %v592
    %v594 = vpop.f32.mrb[0].mxu0
    %v595 = vpop.f32.mrb[0].mxu0
    %v596 = vadd.f32 %v452, %v595
    %v597 = vpop.f32.mrb[0].mxu0
    %598 = vdwg.mxu0
    %v599 = vand.u32 2147483647, %v537
    %v600 = vand.u32 2147483647, %v540
    %v601 = vand.u32 2147483647, %v545
    %v602 = vand.u32 2147483647, %v548
    %v603 = vand.u32 2147483647, %v553
    %v604 = vand.u32 2147483647, %v556
    %v605 = vand.u32 2147483647, %v561
    %v606 = vand.u32 2147483647, %v564
    %v607 = vand.u32 2147483647, %v569
    %v608 = vand.u32 2147483647, %v572
    %v609 = vand.u32 2147483647, %v577
    %v610 = vand.u32 2147483647, %v580
    %v611 = vand.u32 2147483647, %v585
    %v612 = vand.u32 2147483647, %v588
    %v613 = vand.u32 2147483647, %v593
    %v614 = vand.u32 2147483647, %v596
    %v615 = vsub.f32 0.0, %v599
    %v616 = vsub.f32 0.0, %v600
    %v617 = vsub.f32 0.0, %v601
    %v618 = vsub.f32 0.0, %v602
    %v619 = vsub.f32 0.0, %v603
    %v620 = vsub.f32 0.0, %v604
    %v621 = vsub.f32 0.0, %v605
    %v622 = vsub.f32 0.0, %v606
    %v623 = vsub.f32 0.0, %v607
    %v624 = vsub.f32 0.0, %v608
    %v625 = vsub.f32 0.0, %v609
    %v626 = vsub.f32 0.0, %v610
    %v627 = vsub.f32 0.0, %v611
    %v628 = vsub.f32 0.0, %v612
    %v629 = vsub.f32 0.0, %v613
    %v630 = vsub.f32 0.0, %v614
    %v631 = vmul.f32 %v615, 1.442695
    %v632 = vpow.pop %v631
    %v633 = vmul.f32 %v616, 1.442695
    %v634 = vpow.pop %v633
    %v635 = vmul.f32 %v617, 1.442695
    %v636 = vpow.pop %v635
    %v637 = vmul.f32 %v618, 1.442695
    %v638 = vpow.pop %v637
    %v639 = vmul.f32 %v619, 1.442695
    %v640 = vpow.pop %v639
    %v641 = vmul.f32 %v620, 1.442695
    %v642 = vpow.pop %v641
    %v643 = vmul.f32 %v621, 1.442695
    %v644 = vpow.pop %v643
    %v645 = vmul.f32 %v622, 1.442695
    %v646 = vpow.pop %v645
    %v647 = vmul.f32 %v623, 1.442695
    %v648 = vpow.pop %v647
    %v649 = vmul.f32 %v624, 1.442695
    %v650 = vpow.pop %v649
    %v651 = vmul.f32 %v625, 1.442695
    %v652 = vpow.pop %v651
    %v653 = vmul.f32 %v626, 1.442695
    %v654 = vpow.pop %v653
    %v655 = vmul.f32 %v627, 1.442695
    %v656 = vpow.pop %v655
    %v657 = vmul.f32 %v628, 1.442695
    %v658 = vpow.pop %v657
    %v659 = vmul.f32 %v629, 1.442695
    %v660 = vpow.pop %v659
    %v661 = vmul.f32 %v630, 1.442695
    %v662 = vpow.pop %v661
    %v663 = vmul.f32 %v632, %v632
    %v664 = vmul.f32 %v634, %v634
    %v665 = vmul.f32 %v636, %v636
    %v666 = vmul.f32 %v638, %v638
    %v667 = vmul.f32 %v640, %v640
    %v668 = vmul.f32 %v642, %v642
    %v669 = vmul.f32 %v644, %v644
    %v670 = vmul.f32 %v646, %v646
    %v671 = vmul.f32 %v648, %v648
    %v672 = vmul.f32 %v650, %v650
    %v673 = vmul.f32 %v652, %v652
    %v674 = vmul.f32 %v654, %v654
    %v675 = vmul.f32 %v656, %v656
    %v676 = vmul.f32 %v658, %v658
    %v677 = vmul.f32 %v660, %v660
    %v678 = vmul.f32 %v662, %v662
    %vm679 = vcmp.ge.f32.partialorder %v537, 0.0
    %vm680 = vcmp.ge.f32.partialorder %v540, 0.0
    %vm681 = vcmp.ge.f32.partialorder %v545, 0.0
    %vm682 = vcmp.ge.f32.partialorder %v548, 0.0
    %vm683 = vcmp.ge.f32.partialorder %v553, 0.0
    %vm684 = vcmp.ge.f32.partialorder %v556, 0.0
    %vm685 = vcmp.ge.f32.partialorder %v561, 0.0
    %vm686 = vcmp.ge.f32.partialorder %v564, 0.0
    %vm687 = vcmp.ge.f32.partialorder %v569, 0.0
    %vm688 = vcmp.ge.f32.partialorder %v572, 0.0
    %vm689 = vcmp.ge.f32.partialorder %v577, 0.0
    %vm690 = vcmp.ge.f32.partialorder %v580, 0.0
    %vm691 = vcmp.ge.f32.partialorder %v585, 0.0
    %vm692 = vcmp.ge.f32.partialorder %v588, 0.0
    %vm693 = vcmp.ge.f32.partialorder %v593, 0.0
    %vm694 = vcmp.ge.f32.partialorder %v596, 0.0
    %v695 = vmul.f32 %v632, 2.0
    %v696 = vmul.f32 %v634, 2.0
    %v697 = vmul.f32 %v636, 2.0
    %v698 = vmul.f32 %v638, 2.0
    %v699 = vmul.f32 %v640, 2.0
    %v700 = vmul.f32 %v642, 2.0
    %v701 = vmul.f32 %v644, 2.0
    %v702 = vmul.f32 %v646, 2.0
    %v703 = vmul.f32 %v648, 2.0
    %v704 = vmul.f32 %v650, 2.0
    %v705 = vmul.f32 %v652, 2.0
    %v706 = vmul.f32 %v654, 2.0
    %v707 = vmul.f32 %v656, 2.0
    %v708 = vmul.f32 %v658, 2.0
    %v709 = vmul.f32 %v660, 2.0
    %v710 = vmul.f32 %v662, 2.0
    %v711 = vadd.f32 %v695, 1.0
    %v712 = vadd.f32 %v696, 1.0
    %v713 = vadd.f32 %v697, 1.0
    %v714 = vadd.f32 %v698, 1.0
    %v715 = vadd.f32 %v699, 1.0
    %v716 = vadd.f32 %v700, 1.0
    %v717 = vadd.f32 %v701, 1.0
    %v718 = vadd.f32 %v702, 1.0
    %v719 = vadd.f32 %v703, 1.0
    %v720 = vadd.f32 %v704, 1.0
    %v721 = vadd.f32 %v705, 1.0
    %v722 = vadd.f32 %v706, 1.0
    %v723 = vadd.f32 %v707, 1.0
    %v724 = vadd.f32 %v708, 1.0
    %v725 = vadd.f32 %v709, 1.0
    %v726 = vadd.f32 %v710, 1.0
    %v727 = vadd.f32 %v663, %v695
    %v728 = vadd.f32 %v664, %v696
    %v729 = vadd.f32 %v665, %v697
    %v730 = vadd.f32 %v666, %v698
    %v731 = vadd.f32 %v667, %v699
    %v732 = vadd.f32 %v668, %v700
    %v733 = vadd.f32 %v669, %v701
    %v734 = vadd.f32 %v670, %v702
    %v735 = vadd.f32 %v671, %v703
    %v736 = vadd.f32 %v672, %v704
    %v737 = vadd.f32 %v673, %v705
    %v738 = vadd.f32 %v674, %v706
    %v739 = vadd.f32 %v675, %v707
    %v740 = vadd.f32 %v676, %v708
    %v741 = vadd.f32 %v677, %v709
    %v742 = vadd.f32 %v678, %v710
    %v743 = vsel %vm679, %v711, %v727
    %v744 = vsel %vm680, %v712, %v728
    %v745 = vsel %vm681, %v713, %v729
    %v746 = vsel %vm682, %v714, %v730
    %v747 = vsel %vm683, %v715, %v731
    %v748 = vsel %vm684, %v716, %v732
    %v749 = vsel %vm685, %v717, %v733
    %v750 = vsel %vm686, %v718, %v734
    %v751 = vsel %vm687, %v719, %v735
    %v752 = vsel %vm688, %v720, %v736
    %v753 = vsel %vm689, %v721, %v737
    %v754 = vsel %vm690, %v722, %v738
    %v755 = vsel %vm691, %v723, %v739
    %v756 = vsel %vm692, %v724, %v740
    %v757 = vsel %vm693, %v725, %v741
    %v758 = vsel %vm694, %v726, %v742
    %v759 = vmul.f32 %v663, 2.0
    %v760 = vmul.f32 %v664, 2.0
    %v761 = vmul.f32 %v665, 2.0
    %v762 = vmul.f32 %v666, 2.0
    %v763 = vmul.f32 %v667, 2.0
    %v764 = vmul.f32 %v668, 2.0
    %v765 = vmul.f32 %v669, 2.0
    %v766 = vmul.f32 %v670, 2.0
    %v767 = vmul.f32 %v671, 2.0
    %v768 = vmul.f32 %v672, 2.0
    %v769 = vmul.f32 %v673, 2.0
    %v770 = vmul.f32 %v674, 2.0
    %v771 = vmul.f32 %v675, 2.0
    %v772 = vmul.f32 %v676, 2.0
    %v773 = vmul.f32 %v677, 2.0
    %v774 = vmul.f32 %v678, 2.0
    %v775 = vadd.f32 %v759, %v695
    %v776 = vadd.f32 %v760, %v696
    %v777 = vadd.f32 %v761, %v697
    %v778 = vadd.f32 %v762, %v698
    %v779 = vadd.f32 %v763, %v699
    %v780 = vadd.f32 %v764, %v700
    %v781 = vadd.f32 %v765, %v701
    %v782 = vadd.f32 %v766, %v702
    %v783 = vadd.f32 %v767, %v703
    %v784 = vadd.f32 %v768, %v704
    %v785 = vadd.f32 %v769, %v705
    %v786 = vadd.f32 %v770, %v706
    %v787 = vadd.f32 %v771, %v707
    %v788 = vadd.f32 %v772, %v708
    %v789 = vadd.f32 %v773, %v709
    %v790 = vadd.f32 %v774, %v710
    %v791 = vadd.f32 %v775, 1.0
    %v792 = vadd.f32 %v776, 1.0
    %v793 = vadd.f32 %v777, 1.0
    %v794 = vadd.f32 %v778, 1.0
    %v795 = vadd.f32 %v779, 1.0
    %v796 = vadd.f32 %v780, 1.0
    %v797 = vadd.f32 %v781, 1.0
    %v798 = vadd.f32 %v782, 1.0
    %v799 = vadd.f32 %v783, 1.0
    %v800 = vadd.f32 %v784, 1.0
    %v801 = vadd.f32 %v785, 1.0
    %v802 = vadd.f32 %v786, 1.0
    %v803 = vadd.f32 %v787, 1.0
    %v804 = vadd.f32 %v788, 1.0
    %v805 = vadd.f32 %v789, 1.0
    %v806 = vadd.f32 %v790, 1.0
    %v807 = vadd.f32 %v727, 2.0
    %v808 = vadd.f32 %v728, 2.0
    %v809 = vadd.f32 %v729, 2.0
    %v810 = vadd.f32 %v730, 2.0
    %v811 = vadd.f32 %v731, 2.0
    %v812 = vadd.f32 %v732, 2.0
    %v813 = vadd.f32 %v733, 2.0
    %v814 = vadd.f32 %v734, 2.0
    %v815 = vadd.f32 %v735, 2.0
    %v816 = vadd.f32 %v736, 2.0
    %v817 = vadd.f32 %v737, 2.0
    %v818 = vadd.f32 %v738, 2.0
    %v819 = vadd.f32 %v739, 2.0
    %v820 = vadd.f32 %v740, 2.0
    %v821 = vadd.f32 %v741, 2.0
    %v822 = vadd.f32 %v742, 2.0
    %v823 = vsel %vm679, %v791, %v807
    %v824 = vsel %vm680, %v792, %v808
    %v825 = vsel %vm681, %v793, %v809
    %v826 = vsel %vm682, %v794, %v810
    %v827 = vsel %vm683, %v795, %v811
    %v828 = vsel %vm684, %v796, %v812
    %v829 = vsel %vm685, %v797, %v813
    %v830 = vsel %vm686, %v798, %v814
    %v831 = vsel %vm687, %v799, %v815
    %v832 = vsel %vm688, %v800, %v816
    %v833 = vsel %vm689, %v801, %v817
    %v834 = vsel %vm690, %v802, %v818
    %v835 = vsel %vm691, %v803, %v819
    %v836 = vsel %vm692, %v804, %v820
    %v837 = vsel %vm693, %v805, %v821
    %v838 = vsel %vm694, %v806, %v822
    %v839 = vrcp.pop %v823
    %v840 = vrcp.pop %v824
    %v841 = vrcp.pop %v825
    %v842 = vrcp.pop %v826
    %v843 = vrcp.pop %v827
    %v844 = vrcp.pop %v828
    %v845 = vrcp.pop %v829
    %v846 = vrcp.pop %v830
    %v847 = vrcp.pop %v831
    %v848 = vrcp.pop %v832
    %v849 = vrcp.pop %v833
    %v850 = vrcp.pop %v834
    %v851 = vrcp.pop %v835
    %v852 = vrcp.pop %v836
    %v853 = vrcp.pop %v837
    %v854 = vrcp.pop %v838
    %v855 = vmul.f32 %v743, %v839
    %v856 = vmul.f32 %v744, %v840
    %v857 = vmul.f32 %v745, %v841
    %v858 = vmul.f32 %v746, %v842
    %v859 = vmul.f32 %v747, %v843
    %v860 = vmul.f32 %v748, %v844
    %v861 = vmul.f32 %v749, %v845
    %v862 = vmul.f32 %v750, %v846
    %v863 = vmul.f32 %v751, %v847
    %v864 = vmul.f32 %v752, %v848
    %v865 = vmul.f32 %v753, %v849
    %v866 = vmul.f32 %v754, %v850
    %v867 = vmul.f32 %v755, %v851
    %v868 = vmul.f32 %v756, %v852
    %v869 = vmul.f32 %v757, %v853
    %v870 = vmul.f32 %v758, %v854
    %v871 = vmul.f32 %v537, %v855
    %v872 = vmul.f32 %v540, %v856
    %v873 = vmul.f32 %v545, %v857
    %v874 = vmul.f32 %v548, %v858
    %v875 = vmul.f32 %v553, %v859
    %v876 = vmul.f32 %v556, %v860
    %v877 = vmul.f32 %v561, %v861
    %v878 = vmul.f32 %v564, %v862
    %v879 = vmul.f32 %v569, %v863
    %v880 = vmul.f32 %v572, %v864
    %v881 = vmul.f32 %v577, %v865
    %v882 = vmul.f32 %v580, %v866
    %v883 = vmul.f32 %v585, %v867
    %v884 = vmul.f32 %v588, %v868
    %v885 = vmul.f32 %v593, %v869
    %v886 = vmul.f32 %v596, %v870
    %v887 = vand.u32 2147483647, %v871
    %v888 = vand.u32 2147483647, %v872
    %v889 = vand.u32 2147483647, %v873
    %v890 = vand.u32 2147483647, %v874
    %v891 = vand.u32 2147483647, %v875
    %v892 = vand.u32 2147483647, %v876
    %v893 = vand.u32 2147483647, %v877
    %v894 = vand.u32 2147483647, %v878
    %v895 = vand.u32 2147483647, %v879
    %v896 = vand.u32 2147483647, %v880
    %v897 = vand.u32 2147483647, %v881
    %v898 = vand.u32 2147483647, %v882
    %v899 = vand.u32 2147483647, %v883
    %v900 = vand.u32 2147483647, %v884
    %v901 = vand.u32 2147483647, %v885
    %v902 = vand.u32 2147483647, %v886
    %v903 = vsub.f32 0.0, %v887
    %v904 = vsub.f32 0.0, %v888
    %v905 = vsub.f32 0.0, %v889
    %v906 = vsub.f32 0.0, %v890
    %v907 = vsub.f32 0.0, %v891
    %v908 = vsub.f32 0.0, %v892
    %v909 = vsub.f32 0.0, %v893
    %v910 = vsub.f32 0.0, %v894
    %v911 = vsub.f32 0.0, %v895
    %v912 = vsub.f32 0.0, %v896
    %v913 = vsub.f32 0.0, %v897
    %v914 = vsub.f32 0.0, %v898
    %v915 = vsub.f32 0.0, %v899
    %v916 = vsub.f32 0.0, %v900
    %v917 = vsub.f32 0.0, %v901
    %v918 = vsub.f32 0.0, %v902
    %v919 = vmul.f32 %v903, 1.442695
    %v920 = vpow.pop %v919
    %v921 = vmul.f32 %v904, 1.442695
    %v922 = vpow.pop %v921
    %v923 = vmul.f32 %v905, 1.442695
    %v924 = vpow.pop %v923
    %v925 = vmul.f32 %v906, 1.442695
    %v926 = vpow.pop %v925
    %v927 = vmul.f32 %v907, 1.442695
    %v928 = vpow.pop %v927
    %v929 = vmul.f32 %v908, 1.442695
    %v930 = vpow.pop %v929
    %v931 = vmul.f32 %v909, 1.442695
    %v932 = vpow.pop %v931
    %v933 = vmul.f32 %v910, 1.442695
    %v934 = vpow.pop %v933
    %v935 = vmul.f32 %v911, 1.442695
    %v936 = vpow.pop %v935
    %v937 = vmul.f32 %v912, 1.442695
    %v938 = vpow.pop %v937
    %v939 = vmul.f32 %v913, 1.442695
    %v940 = vpow.pop %v939
    %v941 = vmul.f32 %v914, 1.442695
    %v942 = vpow.pop %v941
    %v943 = vmul.f32 %v915, 1.442695
    %v944 = vpow.pop %v943
    %v945 = vmul.f32 %v916, 1.442695
    %v946 = vpow.pop %v945
    %v947 = vmul.f32 %v917, 1.442695
    %v948 = vpow.pop %v947
    %v949 = vmul.f32 %v918, 1.442695
    %v950 = vpow.pop %v949
    %v951 = vmul.f32 %v920, %v920
    %v952 = vmul.f32 %v922, %v922
    %v953 = vmul.f32 %v924, %v924
    %v954 = vmul.f32 %v926, %v926
    %v955 = vmul.f32 %v928, %v928
    %v956 = vmul.f32 %v930, %v930
    %v957 = vmul.f32 %v932, %v932
    %v958 = vmul.f32 %v934, %v934
    %v959 = vmul.f32 %v936, %v936
    %v960 = vmul.f32 %v938, %v938
    %v961 = vmul.f32 %v940, %v940
    %v962 = vmul.f32 %v942, %v942
    %v963 = vmul.f32 %v944, %v944
    %v964 = vmul.f32 %v946, %v946
    %v965 = vmul.f32 %v948, %v948
    %v966 = vmul.f32 %v950, %v950
    %vm967 = vcmp.ge.f32.partialorder %v871, 0.0
    %vm968 = vcmp.ge.f32.partialorder %v872, 0.0
    %vm969 = vcmp.ge.f32.partialorder %v873, 0.0
    %vm970 = vcmp.ge.f32.partialorder %v874, 0.0
    %vm971 = vcmp.ge.f32.partialorder %v875, 0.0
    %vm972 = vcmp.ge.f32.partialorder %v876, 0.0
    %vm973 = vcmp.ge.f32.partialorder %v877, 0.0
    %vm974 = vcmp.ge.f32.partialorder %v878, 0.0
    %vm975 = vcmp.ge.f32.partialorder %v879, 0.0
    %vm976 = vcmp.ge.f32.partialorder %v880, 0.0
    %vm977 = vcmp.ge.f32.partialorder %v881, 0.0
    %vm978 = vcmp.ge.f32.partialorder %v882, 0.0
    %vm979 = vcmp.ge.f32.partialorder %v883, 0.0
    %vm980 = vcmp.ge.f32.partialorder %v884, 0.0
    %vm981 = vcmp.ge.f32.partialorder %v885, 0.0
    %vm982 = vcmp.ge.f32.partialorder %v886, 0.0
    %v983 = vmul.f32 %v920, 2.0
    %v984 = vmul.f32 %v922, 2.0
    %v985 = vmul.f32 %v924, 2.0
    %v986 = vmul.f32 %v926, 2.0
    %v987 = vmul.f32 %v928, 2.0
    %v988 = vmul.f32 %v930, 2.0
    %v989 = vmul.f32 %v932, 2.0
    %v990 = vmul.f32 %v934, 2.0
    %v991 = vmul.f32 %v936, 2.0
    %v992 = vmul.f32 %v938, 2.0
    %v993 = vmul.f32 %v940, 2.0
    %v994 = vmul.f32 %v942, 2.0
    %v995 = vmul.f32 %v944, 2.0
    %v996 = vmul.f32 %v946, 2.0
    %v997 = vmul.f32 %v948, 2.0
    %v998 = vmul.f32 %v950, 2.0
    %v999 = vadd.f32 %v983, 1.0
    %v1000 = vadd.f32 %v984, 1.0
    %v1001 = vadd.f32 %v985, 1.0
    %v1002 = vadd.f32 %v986, 1.0
    %v1003 = vadd.f32 %v987, 1.0
    %v1004 = vadd.f32 %v988, 1.0
    %v1005 = vadd.f32 %v989, 1.0
    %v1006 = vadd.f32 %v990, 1.0
    %v1007 = vadd.f32 %v991, 1.0
    %v1008 = vadd.f32 %v992, 1.0
    %v1009 = vadd.f32 %v993, 1.0
    %v1010 = vadd.f32 %v994, 1.0
    %v1011 = vadd.f32 %v995, 1.0
    %v1012 = vadd.f32 %v996, 1.0
    %v1013 = vadd.f32 %v997, 1.0
    %v1014 = vadd.f32 %v998, 1.0
    %v1015 = vadd.f32 %v951, %v983
    %v1016 = vadd.f32 %v952, %v984
    %v1017 = vadd.f32 %v953, %v985
    %v1018 = vadd.f32 %v954, %v986
    %v1019 = vadd.f32 %v955, %v987
    %v1020 = vadd.f32 %v956, %v988
    %v1021 = vadd.f32 %v957, %v989
    %v1022 = vadd.f32 %v958, %v990
    %v1023 = vadd.f32 %v959, %v991
    %v1024 = vadd.f32 %v960, %v992
    %v1025 = vadd.f32 %v961, %v993
    %v1026 = vadd.f32 %v962, %v994
    %v1027 = vadd.f32 %v963, %v995
    %v1028 = vadd.f32 %v964, %v996
    %v1029 = vadd.f32 %v965, %v997
    %v1030 = vadd.f32 %v966, %v998
    %v1031 = vsel %vm967, %v999, %v1015
    %v1032 = vsel %vm968, %v1000, %v1016
    %v1033 = vsel %vm969, %v1001, %v1017
    %v1034 = vsel %vm970, %v1002, %v1018
    %v1035 = vsel %vm971, %v1003, %v1019
    %v1036 = vsel %vm972, %v1004, %v1020
    %v1037 = vsel %vm973, %v1005, %v1021
    %v1038 = vsel %vm974, %v1006, %v1022
    %v1039 = vsel %vm975, %v1007, %v1023
    %v1040 = vsel %vm976, %v1008, %v1024
    %v1041 = vsel %vm977, %v1009, %v1025
    %v1042 = vsel %vm978, %v1010, %v1026
    %v1043 = vsel %vm979, %v1011, %v1027
    %v1044 = vsel %vm980, %v1012, %v1028
    %v1045 = vsel %vm981, %v1013, %v1029
    %v1046 = vsel %vm982, %v1014, %v1030
    %v1047 = vmul.f32 %v951, 2.0
    %v1048 = vmul.f32 %v952, 2.0
    %v1049 = vmul.f32 %v953, 2.0
    %v1050 = vmul.f32 %v954, 2.0
    %v1051 = vmul.f32 %v955, 2.0
    %v1052 = vmul.f32 %v956, 2.0
    %v1053 = vmul.f32 %v957, 2.0
    %v1054 = vmul.f32 %v958, 2.0
    %v1055 = vmul.f32 %v959, 2.0
    %v1056 = vmul.f32 %v960, 2.0
    %v1057 = vmul.f32 %v961, 2.0
    %v1058 = vmul.f32 %v962, 2.0
    %v1059 = vmul.f32 %v963, 2.0
    %v1060 = vmul.f32 %v964, 2.0
    %v1061 = vmul.f32 %v965, 2.0
    %v1062 = vmul.f32 %v966, 2.0
    %v1063 = vadd.f32 %v1047, %v983
    %v1064 = vadd.f32 %v1048, %v984
    %v1065 = vadd.f32 %v1049, %v985
    %v1066 = vadd.f32 %v1050, %v986
    %v1067 = vadd.f32 %v1051, %v987
    %v1068 = vadd.f32 %v1052, %v988
    %v1069 = vadd.f32 %v1053, %v989
    %v1070 = vadd.f32 %v1054, %v990
    %v1071 = vadd.f32 %v1055, %v991
    %v1072 = vadd.f32 %v1056, %v992
    %v1073 = vadd.f32 %v1057, %v993
    %v1074 = vadd.f32 %v1058, %v994
    %v1075 = vadd.f32 %v1059, %v995
    %v1076 = vadd.f32 %v1060, %v996
    %v1077 = vadd.f32 %v1061, %v997
    %v1078 = vadd.f32 %v1062, %v998
    %v1079 = vadd.f32 %v1063, 1.0
    %v1080 = vadd.f32 %v1064, 1.0
    %v1081 = vadd.f32 %v1065, 1.0
    %v1082 = vadd.f32 %v1066, 1.0
    %v1083 = vadd.f32 %v1067, 1.0
    %v1084 = vadd.f32 %v1068, 1.0
    %v1085 = vadd.f32 %v1069, 1.0
    %v1086 = vadd.f32 %v1070, 1.0
    %v1087 = vadd.f32 %v1071, 1.0
    %v1088 = vadd.f32 %v1072, 1.0
    %v1089 = vadd.f32 %v1073, 1.0
    %v1090 = vadd.f32 %v1074, 1.0
    %v1091 = vadd.f32 %v1075, 1.0
    %v1092 = vadd.f32 %v1076, 1.0
    %v1093 = vadd.f32 %v1077, 1.0
    %v1094 = vadd.f32 %v1078, 1.0
    %v1095 = vadd.f32 %v1015, 2.0
    %v1096 = vadd.f32 %v1016, 2.0
    %v1097 = vadd.f32 %v1017, 2.0
    %v1098 = vadd.f32 %v1018, 2.0
    %v1099 = vadd.f32 %v1019, 2.0
    %v1100 = vadd.f32 %v1020, 2.0
    %v1101 = vadd.f32 %v1021, 2.0
    %v1102 = vadd.f32 %v1022, 2.0
    %v1103 = vadd.f32 %v1023, 2.0
    %v1104 = vadd.f32 %v1024, 2.0
    %v1105 = vadd.f32 %v1025, 2.0
    %v1106 = vadd.f32 %v1026, 2.0
    %v1107 = vadd.f32 %v1027, 2.0
    %v1108 = vadd.f32 %v1028, 2.0
    %v1109 = vadd.f32 %v1029, 2.0
    %v1110 = vadd.f32 %v1030, 2.0
    %v1111 = vsel %vm967, %v1079, %v1095
    %v1112 = vsel %vm968, %v1080, %v1096
    %v1113 = vsel %vm969, %v1081, %v1097
    %v1114 = vsel %vm970, %v1082, %v1098
    %v1115 = vsel %vm971, %v1083, %v1099
    %v1116 = vsel %vm972, %v1084, %v1100
    %v1117 = vsel %vm973, %v1085, %v1101
    %v1118 = vsel %vm974, %v1086, %v1102
    %v1119 = vsel %vm975, %v1087, %v1103
    %v1120 = vsel %vm976, %v1088, %v1104
    %v1121 = vsel %vm977, %v1089, %v1105
    %v1122 = vsel %vm978, %v1090, %v1106
    %v1123 = vsel %vm979, %v1091, %v1107
    %v1124 = vsel %vm980, %v1092, %v1108
    %v1125 = vsel %vm981, %v1093, %v1109
    %v1126 = vsel %vm982, %v1094, %v1110
    %v1127 = vrcp.pop %v1111
    %v1128 = vrcp.pop %v1112
    %v1129 = vrcp.pop %v1113
    %v1130 = vrcp.pop %v1114
    %v1131 = vrcp.pop %v1115
    %v1132 = vrcp.pop %v1116
    %v1133 = vrcp.pop %v1117
    %v1134 = vrcp.pop %v1118
    %v1135 = vrcp.pop %v1119
    %v1136 = vrcp.pop %v1120
    %v1137 = vrcp.pop %v1121
    %v1138 = vrcp.pop %v1122
    %v1139 = vrcp.pop %v1123
    %v1140 = vrcp.pop %v1124
    %v1141 = vrcp.pop %v1125
    %v1142 = vrcp.pop %v1126
    %v1143 = vmul.f32 %v1031, %v1127
    %v1144 = vmul.f32 %v1032, %v1128
    %v1145 = vmul.f32 %v1033, %v1129
    %v1146 = vmul.f32 %v1034, %v1130
    %v1147 = vmul.f32 %v1035, %v1131
    %v1148 = vmul.f32 %v1036, %v1132
    %v1149 = vmul.f32 %v1037, %v1133
    %v1150 = vmul.f32 %v1038, %v1134
    %v1151 = vmul.f32 %v1039, %v1135
    %v1152 = vmul.f32 %v1040, %v1136
    %v1153 = vmul.f32 %v1041, %v1137
    %v1154 = vmul.f32 %v1042, %v1138
    %v1155 = vmul.f32 %v1043, %v1139
    %v1156 = vmul.f32 %v1044, %v1140
    %v1157 = vmul.f32 %v1045, %v1141
    %v1158 = vmul.f32 %v1046, %v1142
    %v1159 = vmul.f32 %v871, %v1143
    %v1160 = vmul.f32 %v872, %v1144
    %v1161 = vmul.f32 %v873, %v1145
    %v1162 = vmul.f32 %v874, %v1146
    %v1163 = vmul.f32 %v875, %v1147
    %v1164 = vmul.f32 %v876, %v1148
    %v1165 = vmul.f32 %v877, %v1149
    %v1166 = vmul.f32 %v878, %v1150
    %v1167 = vmul.f32 %v879, %v1151
    %v1168 = vmul.f32 %v880, %v1152
    %v1169 = vmul.f32 %v881, %v1153
    %v1170 = vmul.f32 %v882, %v1154
    %v1171 = vmul.f32 %v883, %v1155
    %v1172 = vmul.f32 %v884, %v1156
    %v1173 = vmul.f32 %v885, %v1157
    %v1174 = vmul.f32 %v886, %v1158
    %v1175 = vld [vmem:[%s4] sm:$0x1]
    %v1177 = vlaneseq
    %v1178 = vshrl.u32 %v1177, 7
    %v1179 = vsub.s32 0, %v1178
    %v1180 = vrot.slane %v1175, %v1179
    %v1182 = vmul.f32 %v1159, %v1180
    %v1183 = vmul.f32 %v1160, %v1180
    %v1184 = vmul.f32 %v1161, %v1180
    %v1185 = vmul.f32 %v1162, %v1180
    %v1186 = vmul.f32 %v1163, %v1180
    %v1187 = vmul.f32 %v1164, %v1180
    %v1188 = vmul.f32 %v1165, %v1180
    %v1189 = vmul.f32 %v1166, %v1180
    %v1190 = vmul.f32 %v1167, %v1180
    %v1191 = vmul.f32 %v1168, %v1180
    %v1192 = vmul.f32 %v1169, %v1180
    %v1193 = vmul.f32 %v1170, %v1180
    %v1194 = vmul.f32 %v1171, %v1180
    %v1195 = vmul.f32 %v1172, %v1180
    %v1196 = vmul.f32 %v1173, %v1180
    %v1197 = vmul.f32 %v1174, %v1180
    %vm1198 = vcmask 523264
    %v1199 = vsel %vm1198, %v1182, 0.0
    %1200 = vadd.xlane.f32.xlu0 %v1199
    %v1201 = vpop.xlane.xlu0 %1200
    %v1202 = vsel %vm1198, %v1183, 0.0
    %1203 = vadd.xlane.f32.xlu0 %v1202
    %v1204 = vpop.xlane.xlu0 %1203
    %v1205 = vsel %vm1198, %v1184, 0.0
    %1206 = vadd.xlane.f32.xlu0 %v1205
    %v1207 = vpop.xlane.xlu0 %1206
    %v1208 = vsel %vm1198, %v1185, 0.0
    %1209 = vadd.xlane.f32.xlu0 %v1208
    %v1210 = vpop.xlane.xlu0 %1209
    %v1211 = vsel %vm1198, %v1186, 0.0
    %1212 = vadd.xlane.f32.xlu0 %v1211
    %v1213 = vpop.xlane.xlu0 %1212
    %v1214 = vsel %vm1198, %v1187, 0.0
    %1215 = vadd.xlane.f32.xlu0 %v1214
    %v1216 = vpop.xlane.xlu0 %1215
    %v1217 = vsel %vm1198, %v1188, 0.0
    %1218 = vadd.xlane.f32.xlu0 %v1217
    %v1219 = vpop.xlane.xlu0 %1218
    %v1220 = vsel %vm1198, %v1189, 0.0
    %1221 = vadd.xlane.f32.xlu0 %v1220
    %v1222 = vpop.xlane.xlu0 %1221
    %v1223 = vsel %vm1198, %v1190, 0.0
    %1224 = vadd.xlane.f32.xlu0 %v1223
    %v1225 = vpop.xlane.xlu0 %1224
    %v1226 = vsel %vm1198, %v1191, 0.0
    %1227 = vadd.xlane.f32.xlu0 %v1226
    %v1228 = vpop.xlane.xlu0 %1227
    %v1229 = vsel %vm1198, %v1192, 0.0
    %1230 = vadd.xlane.f32.xlu0 %v1229
    %v1231 = vpop.xlane.xlu0 %1230
    %v1232 = vsel %vm1198, %v1193, 0.0
    %1233 = vadd.xlane.f32.xlu0 %v1232
    %v1234 = vpop.xlane.xlu0 %1233
    %v1235 = vsel %vm1198, %v1194, 0.0
    %1236 = vadd.xlane.f32.xlu0 %v1235
    %v1237 = vpop.xlane.xlu0 %1236
    %v1238 = vsel %vm1198, %v1195, 0.0
    %1239 = vadd.xlane.f32.xlu0 %v1238
    %v1240 = vpop.xlane.xlu0 %1239
    %v1241 = vsel %vm1198, %v1196, 0.0
    %1242 = vadd.xlane.f32.xlu0 %v1241
    %v1243 = vpop.xlane.xlu0 %1242
    %v1244 = vsel %vm1198, %v1197, 0.0
    %1245 = vadd.xlane.f32.xlu0 %v1244
    %v1246 = vpop.xlane.xlu0 %1245
    %s1247 = sld [smem:[#allocation2]]
    %v1248 = vstv %s1247
    %v1249 = vadd.f32 %v1201, %v1248
    %v1250 = vadd.f32 %v1204, %v1248
    %v1251 = vadd.f32 %v1207, %v1248
    %v1252 = vadd.f32 %v1210, %v1248
    %v1253 = vadd.f32 %v1213, %v1248
    %v1254 = vadd.f32 %v1216, %v1248
    %v1255 = vadd.f32 %v1219, %v1248
    %v1256 = vadd.f32 %v1222, %v1248
    %v1257 = vadd.f32 %v1225, %v1248
    %v1258 = vadd.f32 %v1228, %v1248
    %v1259 = vadd.f32 %v1231, %v1248
    %v1260 = vadd.f32 %v1234, %v1248
    %v1261 = vadd.f32 %v1237, %v1248
    %v1262 = vadd.f32 %v1240, %v1248
    %v1263 = vadd.f32 %v1243, %v1248
    %v1264 = vadd.f32 %v1246, %v1248
    %vm1265 = vcmask 7168
    %1266 = vst.msk [vmem:[%s6] sm:$0xff] %vm1265, %v1249
    %1267 = vst.msk [vmem:[%s6 + $0x8] sm:$0xff] %vm1265, %v1250
    %1268 = vst.msk [vmem:[%s6 + $0x10] sm:$0xff] %vm1265, %v1251
    %1269 = vst.msk [vmem:[%s6 + $0x18] sm:$0xff] %vm1265, %v1252
    %1270 = vst.msk [vmem:[%s6 + $0x20] sm:$0xff] %vm1265, %v1253
    %1271 = vst.msk [vmem:[%s6 + $0x28] sm:$0xff] %vm1265, %v1254
    %1272 = vst.msk [vmem:[%s6 + $0x30] sm:$0xff] %vm1265, %v1255
    %1273 = vst.msk [vmem:[%s6 + $0x38] sm:$0xff] %vm1265, %v1256
    %1274 = vst.msk [vmem:[%s6 + $0x40] sm:$0xff] %vm1265, %v1257
    %1275 = vst.msk [vmem:[%s6 + $0x48] sm:$0xff] %vm1265, %v1258
    %1276 = vst.msk [vmem:[%s6 + $0x50] sm:$0xff] %vm1265, %v1259
    %1277 = vst.msk [vmem:[%s6 + $0x58] sm:$0xff] %vm1265, %v1260
    %1278 = vst.msk [vmem:[%s6 + $0x60] sm:$0xff] %vm1265, %v1261
    %1279 = vst.msk [vmem:[%s6 + $0x68] sm:$0xff] %vm1265, %v1262
    %1280 = vst.msk [vmem:[%s6 + $0x70] sm:$0xff] %vm1265, %v1263
    %1281 = vst.msk [vmem:[%s6 + $0x78] sm:$0xff] %vm1265, %v1264
    // Predicated region
    $region30: #{tpu_custom_call.1} parent=1 // pred_check
      _
    $region31: #{tpu_custom_call.1} parent=1 // pred_check_branch
      %1283 = sbr.rel (0) target = $region33
    $region32: #{tpu_custom_call.1} parent=1 // pred_region
      _
    $region33: #{tpu_custom_call.1} parent=1 // pred_fallthru
      _
    // Predicated region
    $region34: #{tpu_custom_call.1} parent=1 // pred_check
      _
    $region35: #{tpu_custom_call.1} parent=1 // pred_check_branch
      %1285 = sbr.rel (0) target = $region37
    $region36: #{tpu_custom_call.1} parent=1 // pred_region
      _
    $region37: #{tpu_custom_call.1} parent=1 // pred_fallthru
      _
    %1286 = vsyncpa [#allocation4], 1

</llo_original>
